<compile_context>
chip_gen: v5e
topology: v5e:2x2
jax: 0.10.0
libtpu: 0.0.40
codegen_flags: <defaults>
</compile_context>

<pallas_src>
import functools

import jax
import jax.numpy as jnp
from jax.experimental import pallas as pl
from jax.experimental.pallas import tpu as pltpu


def _weight_norm(v, g):
    # PyTorch nn.utils.weight_norm with default dim=0:
    #   w = g * v / ||v||_2  (norm over all dims except 0, per out-channel)
    norm = jnp.sqrt(jnp.sum(v * v, axis=tuple(range(1, v.ndim)), keepdims=True))
    return g * v / norm


def _leaky_relu(v, slope):
    # max(v, slope*v) == LeakyReLU for 0 < slope < 1: two VPU ops, no select.
    return jnp.maximum(v, slope * v)


def _make_kernel(C, tile_t, K, dilation, pad, slope):
    bf16 = jnp.bfloat16

    def kernel(x_ref, halo_ref, w1_ref, w2_ref, wsc_ref, bias_ref, o_ref):
        xb = x_ref[0]                          # (C, tile_t) f32 input tile
        ab = _leaky_relu(xb, slope)            # activation, f32 on the VPU
        ah = _leaky_relu(halo_ref[0], slope)   # (C, 2*pad): [left halo | right halo]

        # ---- dilated conv1: K accumulating MXU dots on lane-shifted taps ----
        # K is tiny and static -> fully unrolled; taps are built in registers
        # (no im2col scratch, no vst pass), cast to bf16 only at the matmul.
        acc = None
        for k in range(K):
            s = k * dilation - pad             # lane shift of this tap
            if s == 0:
                tap = ab
            elif s < 0:
                m = -s                         # pull m columns from the left halo
                tap = jnp.concatenate(
                    [ah[:, pad - m:pad], ab[:, :tile_t - m]], axis=1)
            else:                              # pull s columns from the right halo
                tap = jnp.concatenate(
                    [ab[:, s:], ah[:, pad:pad + s]], axis=1)
            d = jnp.dot(w1_ref[k], tap.astype(bf16),
                        preferred_element_type=jnp.float32)
            acc = d if acc is None else acc + d
        h = acc + bias_ref[:, 0:1]             # (C, tile_t) f32

        h2 = _leaky_relu(h, slope)

        # ---- conv2 (1x1) + shortcut (1x1): two accumulating dots ----
        # x is read straight from its input block (no stacked-operand copy).
        out = (jnp.dot(w2_ref[...], h2.astype(bf16),
                       preferred_element_type=jnp.float32)
               + jnp.dot(wsc_ref[...], xb.astype(bf16),
                         preferred_element_type=jnp.float32)
               + bias_ref[:, 1:2])

        o_ref[0] = out.astype(o_ref.dtype)

    return kernel


def decoder_resnet_block(x, params, *, dilation=1, kernel_size=3,
                         leaky_relu_slope=0.2, tile_t=512):
    """x: (B, C, T) float32. params: dict of weight-norm (v, g) and biases."""
    B, C, T = x.shape
    K = kernel_size
    pad = dilation  # the PyTorch module hard-codes padding=dilation
    # The residual add only type-checks when the dilated conv is length
    # preserving, which with padding=dilation forces kernel_size == 3.
    assert dilation * (K - 1) == 2 * pad, "module requires kernel_size == 3"
    assert pad < T, "reflect padding requires pad < T"
    assert C % 8 == 0, "n_channel must be a multiple of 8 (f32 sublane tile)"

    # Time tiling: a multiple of 128 lanes (>= 512 recommended for production),
    # or a single full-extent tile when T is short.
    if tile_t >= T:
        tile_t = T
    else:
        assert T % tile_t == 0 and tile_t % 128 == 0, (
            "tile_t must divide T and be a multiple of 128")
    assert pad < tile_t, "halo must be narrower than a tile"
    nt = T // tile_t

    # Fold weight norm into plain conv weights (glue, not hot path) and cast
    # MXU operands to bf16; accumulation stays f32 inside the kernel.
    w1 = _weight_norm(params["conv1_v"], params["conv1_g"])        # (C, C, K)
    w2 = _weight_norm(params["conv2_v"], params["conv2_g"])        # (C, C, 1)
    ws = _weight_norm(params["sc_v"], params["sc_g"])              # (C, C, 1)
    w1t = jnp.transpose(w1, (2, 0, 1)).astype(jnp.bfloat16)        # (K, C, C) tap-major
    w2m = w2[:, :, 0].astype(jnp.bfloat16)                         # (C, C)
    wsm = ws[:, :, 0].astype(jnp.bfloat16)                         # (C, C)
    # Packed biases: col 0 = conv1 bias, col 1 = conv2 bias + shortcut bias.
    bias = jnp.stack([params["conv1_b"],
                      params["conv2_b"] + params["sc_b"]], axis=1)  # (C, 2) f32

    # Per-tile halo columns: the dilated conv needs `pad` input columns on each
    # side of every tile.  Only 2*pad columns per tile are gathered here (with
    # reflect padding already applied at the sequence ends), so the bulk of x is
    # streamed from HBM exactly once by the kernel itself.
    x_ext = jnp.pad(x, ((0, 0), (0, 0), (pad, pad)), mode="reflect")
    halos = []
    for t in range(nt):
        left = x_ext[:, :, t * tile_t: t * tile_t + pad]
        right = x_ext[:, :, (t + 1) * tile_t + pad: (t + 1) * tile_t + 2 * pad]
        halos.append(jnp.concatenate([left, right], axis=-1))       # (B, C, 2*pad)
    halo = jnp.stack(halos, axis=1).reshape(B * nt, C, 2 * pad)

    kernel = _make_kernel(C, tile_t, K, dilation, pad, leaky_relu_slope)

    # Explicit VMEM budget: double-buffered x/out tiles + resident weights and
    # halos, with margin; capped below v7x's 64 MiB physical VMEM.
    blk_bytes = C * tile_t * 4
    weight_bytes = ((K + 2) * C * C * 2 + C * 2 * 4
                    + B * nt * C * 2 * pad * 4)
    vmem_limit = int(min(48 * 1024 * 1024,
                         max(16 * 1024 * 1024, 8 * blk_bytes + 4 * weight_bytes)))

    return pl.pallas_call(
        kernel,
        out_shape=jax.ShapeDtypeStruct((B, C, T), x.dtype),
        grid=(B, nt),
        in_specs=[
            pl.BlockSpec((1, C, tile_t), lambda b, t: (b, 0, t)),            # x tile
            pl.BlockSpec((1, C, 2 * pad), lambda b, t: (b * nt + t, 0, 0)),  # halo
            pl.BlockSpec((K, C, C), lambda b, t: (0, 0, 0)),                 # conv1 taps (resident)
            pl.BlockSpec((C, C), lambda b, t: (0, 0)),                       # conv2 (resident)
            pl.BlockSpec((C, C), lambda b, t: (0, 0)),                       # shortcut (resident)
            pl.BlockSpec((C, 2), lambda b, t: (0, 0)),                       # packed biases
        ],
        out_specs=pl.BlockSpec((1, C, tile_t), lambda b, t: (b, 0, t)),
        compiler_params=pltpu.CompilerParams(
            dimension_semantics=("parallel", "parallel"),
            vmem_limit_bytes=vmem_limit),
    )(x, halo, w1t, w2m, wsm, bias)


def _reference(x, params, *, dilation=1, kernel_size=3, leaky_relu_slope=0.2):
    """Pure-JAX f32 reference mirroring the PyTorch module."""
    pad = dilation
    w1 = _weight_norm(params["conv1_v"], params["conv1_g"])
    w2 = _weight_norm(params["conv2_v"], params["conv2_g"])
    ws = _weight_norm(params["sc_v"], params["sc_g"])

    def lrelu(v):
        return jnp.where(v > 0, v, leaky_relu_slope * v)

    def conv1d(inp, w, b, dil):
        out = jax.lax.conv_general_dilated(
            inp, w, window_strides=(1,), padding="VALID",
            rhs_dilation=(dil,), dimension_numbers=("NCH", "OIH", "NCH"))
        return out + b[None, :, None]

    a = lrelu(x)
    a = jnp.pad(a, ((0, 0), (0, 0), (pad, pad)), mode="reflect")
    h = conv1d(a, w1, params["conv1_b"], dilation)
    h = lrelu(h)
    blk = conv1d(h, w2, params["conv2_b"], 1)
    sc = conv1d(x, ws, params["sc_b"], 1)
    return blk + sc


def init_params(key, n_channel, kernel_size=3):
    ks = jax.random.split(key, 9)
    C, K = n_channel, kernel_size
    return {
        "conv1_v": jax.random.normal(ks[0], (C, C, K), jnp.float32) * 0.2,
        "conv1_g": jax.random.uniform(ks[1], (C, 1, 1), jnp.float32, 0.5, 1.5),
        "conv1_b": jax.random.normal(ks[2], (C,), jnp.float32) * 0.1,
        "conv2_v": jax.random.normal(ks[3], (C, C, 1), jnp.float32) * 0.2,
        "conv2_g": jax.random.uniform(ks[4], (C, 1, 1), jnp.float32, 0.5, 1.5),
        "conv2_b": jax.random.normal(ks[5], (C,), jnp.float32) * 0.1,
        "sc_v": jax.random.normal(ks[6], (C, C, 1), jnp.float32) * 0.2,
        "sc_g": jax.random.uniform(ks[7], (C, 1, 1), jnp.float32, 0.5, 1.5),
        "sc_b": jax.random.normal(ks[8], (C,), jnp.float32) * 0.1,
    }


if __name__ == "__main__":
    # Small demo shapes; T=256 with tile_t=128 exercises the multi-tile halo
    # path (nt=2) as well as both TensorCore-parallel grid axes.
    B, C, T = 2, 8, 256
    TILE_T = 128
    kernel_size, slope = 3, 0.2

    key = jax.random.PRNGKey(0)
    kx, kp = jax.random.split(key)
    x = jax.random.normal(kx, (B, C, T), jnp.float32)
    params = init_params(kp, C, kernel_size)

    # Check both an undilated and a dilated configuration (MelGAN uses 3^n).
    for dilation in (1, 3):
        fn = functools.partial(decoder_resnet_block, dilation=dilation,
                               kernel_size=kernel_size, leaky_relu_slope=slope,
                               tile_t=TILE_T)
        out = jax.block_until_ready(jax.jit(fn)(x, params))

        ref = _reference(x, params, dilation=dilation, kernel_size=kernel_size,
                         leaky_relu_slope=slope)
        assert out.shape == (B, C, T)
        # bf16 matmul operands (f32 accumulation) -> loosened tolerance vs the
        # pure-f32 reference; real structural bugs are O(1) and still caught.
        err = float(jnp.max(jnp.abs(out - ref)))
        assert jnp.allclose(out, ref, atol=6e-2, rtol=6e-2), (
            f"mismatch vs reference (dilation={dilation}), max abs err={err}")

    print("KERNEL_OK")
</pallas_src>

<mosaic_0001>
module attributes {stable_mosaic.version = 11 : i64} {
  func.func @kernel(%arg0: i32, %arg1: i32, %arg2: memref<1x8x128xf32, #tpu.memory_space<vmem>>, %arg3: memref<1x8x2xf32, #tpu.memory_space<vmem>>, %arg4: memref<3x8x8xbf16, #tpu.memory_space<vmem>>, %arg5: memref<8x8xbf16, #tpu.memory_space<vmem>>, %arg6: memref<8x8xbf16, #tpu.memory_space<vmem>>, %arg7: memref<8x2xf32, #tpu.memory_space<vmem>>, %arg8: memref<1x8x128xf32, #tpu.memory_space<vmem>>) attributes {dimension_semantics = [#tpu.dimension_semantics<parallel>, #tpu.dimension_semantics<parallel>], iteration_bounds = array<i64: 2, 2>, scalar_prefetch = 0 : i64, scratch_operands = 0 : i64, tpu.core_type = #tpu.core_type<tc>, window_params = [{transform_indices = @transform_0, window_bounds = array<i64: 1, 8, 128>}, {transform_indices = @transform_1, window_bounds = array<i64: 1, 8, 2>}, {pipeline_mode = #tpu.pipeline_mode<synchronous>, transform_indices = @transform_2, window_bounds = array<i64: 3, 8, 8>}, {pipeline_mode = #tpu.pipeline_mode<synchronous>, transform_indices = @transform_3, window_bounds = array<i64: 8, 8>}, {pipeline_mode = #tpu.pipeline_mode<synchronous>, transform_indices = @transform_4, window_bounds = array<i64: 8, 8>}, {pipeline_mode = #tpu.pipeline_mode<synchronous>, transform_indices = @transform_5, window_bounds = array<i64: 8, 2>}, {transform_indices = @transform_6, window_bounds = array<i64: 1, 8, 128>}]} {
    %c0 = arith.constant 0 : index
    %c0_0 = arith.constant 0 : index
    %c0_1 = arith.constant 0 : index
    %0 = vector.load %arg2[%c0, %c0_0, %c0_1] : memref<1x8x128xf32, #tpu.memory_space<vmem>>, vector<1x8x128xf32>
    %1 = vector.shape_cast %0 : vector<1x8x128xf32> to vector<8x128xf32>
    %cst = arith.constant 2.000000e-01 : f32
    %2 = vector.broadcast %cst : f32 to vector<8x128xf32>
    %3 = arith.mulf %2, %1 : vector<8x128xf32>
    %4 = arith.maximumf %1, %3 : vector<8x128xf32>
    %c0_2 = arith.constant 0 : index
    %c0_3 = arith.constant 0 : index
    %c0_4 = arith.constant 0 : index
    %5 = vector.load %arg3[%c0_2, %c0_3, %c0_4] : memref<1x8x2xf32, #tpu.memory_space<vmem>>, vector<1x8x2xf32>
    %6 = vector.shape_cast %5 : vector<1x8x2xf32> to vector<8x2xf32>
    %cst_5 = arith.constant 2.000000e-01 : f32
    %7 = vector.broadcast %cst_5 : f32 to vector<8x2xf32>
    %8 = arith.mulf %7, %6 : vector<8x2xf32>
    %9 = arith.maximumf %6, %8 : vector<8x2xf32>
    %10 = vector.extract_strided_slice %9 {offsets = [0, 0], sizes = [8, 1], strides = [1, 1]} : vector<8x2xf32> to vector<8x1xf32>
    %11 = vector.extract_strided_slice %4 {offsets = [0, 0], sizes = [8, 127], strides = [1, 1]} : vector<8x128xf32> to vector<8x127xf32>
    %12 = tpu.concatenate %10, %11 in 1 : vector<8x1xf32>, vector<8x127xf32> -> vector<8x128xf32>
    %c0_6 = arith.constant 0 : index
    %c0_7 = arith.constant 0 : index
    %c0_8 = arith.constant 0 : index
    %13 = vector.load %arg4[%c0_6, %c0_7, %c0_8] : memref<3x8x8xbf16, #tpu.memory_space<vmem>>, vector<1x8x8xbf16>
    %14 = vector.shape_cast %13 : vector<1x8x8xbf16> to vector<8x8xbf16>
    %15 = arith.truncf %12 : vector<8x128xf32> to vector<8x128xbf16>
    %cst_9 = arith.constant dense<0.000000e+00> : vector<8x128xf32>
    %16 = tpu.matmul %14, %15, %cst_9 {dimension_numbers = #tpu.dot_dimension_numbers<[1], [0], [0], [1], [0, 0, 1, 1], [], []>} : vector<8x8xbf16>, vector<8x128xbf16>, vector<8x128xf32> -> vector<8x128xf32>
    %c1 = arith.constant 1 : index
    %c0_10 = arith.constant 0 : index
    %c0_11 = arith.constant 0 : index
    %17 = vector.load %arg4[%c1, %c0_10, %c0_11] : memref<3x8x8xbf16, #tpu.memory_space<vmem>>, vector<1x8x8xbf16>
    %18 = vector.shape_cast %17 : vector<1x8x8xbf16> to vector<8x8xbf16>
    %19 = arith.truncf %4 : vector<8x128xf32> to vector<8x128xbf16>
    %cst_12 = arith.constant dense<0.000000e+00> : vector<8x128xf32>
    %20 = tpu.matmul %18, %19, %cst_12 {dimension_numbers = #tpu.dot_dimension_numbers<[1], [0], [0], [1], [0, 0, 1, 1], [], []>} : vector<8x8xbf16>, vector<8x128xbf16>, vector<8x128xf32> -> vector<8x128xf32>
    %21 = arith.addf %16, %20 : vector<8x128xf32>
    %22 = vector.extract_strided_slice %4 {offsets = [0, 1], sizes = [8, 127], strides = [1, 1]} : vector<8x128xf32> to vector<8x127xf32>
    %23 = vector.extract_strided_slice %9 {offsets = [0, 1], sizes = [8, 1], strides = [1, 1]} : vector<8x2xf32> to vector<8x1xf32>
    %24 = tpu.concatenate %22, %23 in 1 : vector<8x127xf32>, vector<8x1xf32> -> vector<8x128xf32>
    %c2 = arith.constant 2 : index
    %c0_13 = arith.constant 0 : index
    %c0_14 = arith.constant 0 : index
    %25 = vector.load %arg4[%c2, %c0_13, %c0_14] : memref<3x8x8xbf16, #tpu.memory_space<vmem>>, vector<1x8x8xbf16>
    %26 = vector.shape_cast %25 : vector<1x8x8xbf16> to vector<8x8xbf16>
    %27 = arith.truncf %24 : vector<8x128xf32> to vector<8x128xbf16>
    %cst_15 = arith.constant dense<0.000000e+00> : vector<8x128xf32>
    %28 = tpu.matmul %26, %27, %cst_15 {dimension_numbers = #tpu.dot_dimension_numbers<[1], [0], [0], [1], [0, 0, 1, 1], [], []>} : vector<8x8xbf16>, vector<8x128xbf16>, vector<8x128xf32> -> vector<8x128xf32>
    %29 = arith.addf %21, %28 : vector<8x128xf32>
    %c0_16 = arith.constant 0 : index
    %c0_17 = arith.constant 0 : index
    %30 = vector.load %arg7[%c0_16, %c0_17] : memref<8x2xf32, #tpu.memory_space<vmem>>, vector<8x1xf32>
    %31 = vector.broadcast %30 : vector<8x1xf32> to vector<8x128xf32>
    %32 = arith.addf %29, %31 : vector<8x128xf32>
    %cst_18 = arith.constant 2.000000e-01 : f32
    %33 = vector.broadcast %cst_18 : f32 to vector<8x128xf32>
    %34 = arith.mulf %33, %32 : vector<8x128xf32>
    %35 = arith.maximumf %32, %34 : vector<8x128xf32>
    %c0_19 = arith.constant 0 : index
    %c0_20 = arith.constant 0 : index
    %36 = vector.load %arg5[%c0_19, %c0_20] : memref<8x8xbf16, #tpu.memory_space<vmem>>, vector<8x8xbf16>
    %37 = arith.truncf %35 : vector<8x128xf32> to vector<8x128xbf16>
    %cst_21 = arith.constant dense<0.000000e+00> : vector<8x128xf32>
    %38 = tpu.matmul %36, %37, %cst_21 {dimension_numbers = #tpu.dot_dimension_numbers<[1], [0], [0], [1], [0, 0, 1, 1], [], []>} : vector<8x8xbf16>, vector<8x128xbf16>, vector<8x128xf32> -> vector<8x128xf32>
    %c0_22 = arith.constant 0 : index
    %c0_23 = arith.constant 0 : index
    %39 = vector.load %arg6[%c0_22, %c0_23] : memref<8x8xbf16, #tpu.memory_space<vmem>>, vector<8x8xbf16>
    %40 = arith.truncf %1 : vector<8x128xf32> to vector<8x128xbf16>
    %cst_24 = arith.constant dense<0.000000e+00> : vector<8x128xf32>
    %41 = tpu.matmul %39, %40, %cst_24 {dimension_numbers = #tpu.dot_dimension_numbers<[1], [0], [0], [1], [0, 0, 1, 1], [], []>} : vector<8x8xbf16>, vector<8x128xbf16>, vector<8x128xf32> -> vector<8x128xf32>
    %42 = arith.addf %38, %41 : vector<8x128xf32>
    %c0_25 = arith.constant 0 : index
    %c1_26 = arith.constant 1 : index
    %43 = vector.load %arg7[%c0_25, %c1_26] : memref<8x2xf32, #tpu.memory_space<vmem>>, vector<8x1xf32>
    %44 = vector.broadcast %43 : vector<8x1xf32> to vector<8x128xf32>
    %45 = arith.addf %42, %44 : vector<8x128xf32>
    %c0_27 = arith.constant 0 : index
    %c0_28 = arith.constant 0 : index
    %c0_29 = arith.constant 0 : index
    %46 = vector.load %arg8[%c0_27, %c0_28, %c0_29] : memref<1x8x128xf32, #tpu.memory_space<vmem>>, vector<1x8x128xf32>
    %47 = vector.shape_cast %46 : vector<1x8x128xf32> to vector<8x128xf32>
    %48 = vector.shape_cast %45 : vector<8x128xf32> to vector<1x8x128xf32>
    tpu.vector_store %arg8[%c0_27, %c0_28, %c0_29], %48 {strides = array<i32>} : memref<1x8x128xf32, #tpu.memory_space<vmem>>, vector<1x8x128xf32>,
    return
  }
  func.func @transform_0(%arg0: i32, %arg1: i32) -> (i32, i32, i32) {
    %c0_i32 = arith.constant 0 : i32
    %c0_i32_0 = arith.constant 0 : i32
    return %arg0, %c0_i32, %arg1 : i32, i32, i32
  }
  func.func @transform_1(%arg0: i32, %arg1: i32) -> (i32, i32, i32) {
    %c2_i32 = arith.constant 2 : i32
    %0 = arith.muli %arg0, %c2_i32 : i32
    %1 = arith.addi %0, %arg1 : i32
    %c0_i32 = arith.constant 0 : i32
    %c0_i32_0 = arith.constant 0 : i32
    %c0_i32_1 = arith.constant 0 : i32
    return %1, %c0_i32, %c0_i32_0 : i32, i32, i32
  }
  func.func @transform_2(%arg0: i32, %arg1: i32) -> (i32, i32, i32) {
    %c0_i32 = arith.constant 0 : i32
    %c0_i32_0 = arith.constant 0 : i32
    %c0_i32_1 = arith.constant 0 : i32
    %c0_i32_2 = arith.constant 0 : i32
    return %c0_i32, %c0_i32_0, %c0_i32_1 : i32, i32, i32
  }
  func.func @transform_3(%arg0: i32, %arg1: i32) -> (i32, i32) {
    %c0_i32 = arith.constant 0 : i32
    %c0_i32_0 = arith.constant 0 : i32
    %c0_i32_1 = arith.constant 0 : i32
    return %c0_i32, %c0_i32_0 : i32, i32
  }
  func.func @transform_4(%arg0: i32, %arg1: i32) -> (i32, i32) {
    %c0_i32 = arith.constant 0 : i32
    %c0_i32_0 = arith.constant 0 : i32
    %c0_i32_1 = arith.constant 0 : i32
    return %c0_i32, %c0_i32_0 : i32, i32
  }
  func.func @transform_5(%arg0: i32, %arg1: i32) -> (i32, i32) {
    %c0_i32 = arith.constant 0 : i32
    %c0_i32_0 = arith.constant 0 : i32
    %c0_i32_1 = arith.constant 0 : i32
    return %c0_i32, %c0_i32_0 : i32, i32
  }
  func.func @transform_6(%arg0: i32, %arg1: i32) -> (i32, i32, i32) {
    %c0_i32 = arith.constant 0 : i32
    %c0_i32_0 = arith.constant 0 : i32
    return %arg0, %c0_i32, %arg1 : i32, i32, i32
  }
}

</mosaic_0001>

<llo_original>
// kernel: decoder_resnet_block.1
$region0: #{decoder_resnet_block.1}
  #allocation0 [shape = 'u32[]', space=smem, size = 0x4, offset = 0x4, fixed_abs, tag = 'smem constant byte address 0x4 - core index']
  #allocation1 [shape = 'u32[72,128]{1,0:T(1,128)}', space=vmem, size = 0x9000, scoped, tag = 'internal scratch']
  %s0 = inlined_call_operand.vmem [shape: f32[2,8,256], index: 0, kind: input, shape index: {}]
  %s1 = inlined_call_operand.vmem [shape: f32[4,8,2], index: 1, kind: input, shape index: {}]
  %s2 = inlined_call_operand.vmem [shape: bf16[3,8,8], index: 2, kind: input, shape index: {}]
  %s3 = inlined_call_operand.vmem [shape: bf16[8,8], index: 3, kind: input, shape index: {}]
  %s4 = inlined_call_operand.vmem [shape: bf16[8,8], index: 4, kind: input, shape index: {}]
  %s5 = inlined_call_operand.vmem [shape: f32[8,2], index: 5, kind: input, shape index: {}]
  %s6 = inlined_call_operand.hbm [shape: f32[2,8,256], index: 6, kind: output, shape index: {}]
  %s7 = sld [smem:[#allocation0]]
  $region57: #{decoder_resnet_block.1} parent=0
    _
  %s9 = ssub.s32 1, %s7
  %s10 = scalar_select 0, %s9, %s7
  $region1: #{decoder_resnet_block.1} parent=0
    #allocation2 [shape = 'u8[8192]{0}', space=vmem, size = 0x2000, scoped, tag = 'output window, operand 0']
    #allocation3 [shape = 's32[2]{0}', space=sflag, size = 0x8, scoped, tag = 'scoped memory for decoder_resnet_block.1']
    %11 = vsyncpa [#allocation3], 0
    %s12 = scalar_lea.sflag [#allocation3], 1
    %13 = vsyncpa %s12, 0
    loop: start=0, step=1, limit=6
    $region2: #{decoder_resnet_block.1} parent=1 // loop_pre_header
      _
    $region3: #{decoder_resnet_block.1} parent=1 // loop_header
      %s15 = sphi 0, %s19
      %p16 = scmp.ge.s32.totalorder %s15, 6
      %s22 = sphi 0, %s34
      %s23 = sphi 0, %s30
      %s24 = sphi 0, %s22
      %s25 = sphi 0, %s23
      %s26 = sphi 0, %s24
      %s27 = sphi 0, %s25
      %s39 = sphi 0, %s41
      %s42 = sphi 0, %s39
      %s43 = sphi 0, %s42
      %s59 = sphi 0, %s43
      %s69 = sphi 0, %s71
      %s72 = sphi 0, %s69
      %s73 = sphi 0, %s72
      %s89 = sphi 0, %s73
      %s93 = sphi 0, %s93
      %s95 = sphi 0, %s93
      %s96 = sphi 0, %s95
      %s110 = sphi 0, %s96
      %s114 = sphi 0, %s114
      %s116 = sphi 0, %s114
      %s117 = sphi 0, %s116
      %s131 = sphi 0, %s117
      %s135 = sphi 0, %s135
      %s137 = sphi 0, %s135
      %s138 = sphi 0, %s137
      %s152 = sphi 0, %s138
      %s156 = sphi 0, %s156
      %s158 = sphi 0, %s156
      %s159 = sphi 0, %s158
      %s173 = sphi 0, %s159
      %s181 = sphi 0, %s183
      %s184 = sphi 0, %s181
      %s185 = sphi 0, %s184
      %s201 = sphi 0, %s185
    $region4: #{decoder_resnet_block.1} parent=1 // loop_header_branch
      %18 = sbr.rel (%p16) target = $region8
    $region5: #{decoder_resnet_block.1} parent=1 // loop_body
      %s20 = ssub.s32 %s15, 1
      %s21 = ssub.s32 %s15, 2
      %s28 = sadd.s32 1, %s23
      %p29 = scmp.ge.s32.totalorder %s28, 2
      %s30 = scalar_select %p29, 0, %s28
      %s31 = sadd.s32 1, %s22
      %s32 = scalar_select %p29, %s31, %s22
      %p33 = scmp.ge.s32.totalorder %s32, 2
      %s34 = scalar_select %p33, 0, %s32
      %s35 = ssub.s32 %s22, %s34
      %s36 = ssub.s32 %s23, %s30
      %s37 = sor.u32 %s35, %s36
      %p38 = scmp.eq.s32.totalorder %s37, 0
      %s40 = sadd.s32 %s39, 1
      %s41 = scalar_select %p38, %s39, %s40
      %p44 = pneg %p38
      %p45 = scmp.eq.s32.totalorder %s15, 3
      %p46 = por %p44, %p45
      %p47 = scmp.ne.s32.totalorder %s39, %s42
      %p48 = scmp.eq.s32.totalorder %s15, 0
      %p49 = por %p47, %p48
      %p50 = scmp.ne.s32.totalorder %s39, %s42
      %p51 = scmp.eq.s32.totalorder %s20, 3
      %p52 = por %p50, %p51
      %p53 = scmp.ne.s32.totalorder %s42, %s43
      %p54 = scmp.eq.s32.totalorder %s20, 0
      %p55 = por %p53, %p54
      %p56 = scmp.ne.s32.totalorder %s42, %s43
      %p57 = scmp.eq.s32.totalorder %s21, 3
      %p58 = por %p56, %p57
      %p60 = scmp.ne.s32.totalorder %s43, %s59
      %p61 = scmp.eq.s32.totalorder %s21, 0
      %p62 = por %p60, %p61
      %s63 = smul.u32 %s22, 2
      %s64 = sadd.s32 %s63, %s23
      %s65 = smul.u32 %s34, 2
      %s66 = sadd.s32 %s65, %s30
      %s67 = ssub.s32 %s64, %s66
      %p68 = scmp.eq.s32.totalorder %s67, 0
      %s70 = sadd.s32 %s69, 1
      %s71 = scalar_select %p68, %s69, %s70
      %p74 = pneg %p68
      %p75 = scmp.eq.s32.totalorder %s15, 3
      %p76 = por %p74, %p75
      %p77 = scmp.ne.s32.totalorder %s69, %s72
      %p78 = scmp.eq.s32.totalorder %s15, 0
      %p79 = por %p77, %p78
      %p80 = scmp.ne.s32.totalorder %s69, %s72
      %p81 = scmp.eq.s32.totalorder %s20, 3
      %p82 = por %p80, %p81
      %p83 = scmp.ne.s32.totalorder %s72, %s73
      %p84 = scmp.eq.s32.totalorder %s20, 0
      %p85 = por %p83, %p84
      %p86 = scmp.ne.s32.totalorder %s72, %s73
      %p87 = scmp.eq.s32.totalorder %s21, 3
      %p88 = por %p86, %p87
      %p90 = scmp.ne.s32.totalorder %s73, %s89
      %p91 = scmp.eq.s32.totalorder %s21, 0
      %p92 = por %p90, %p91
      %s94 = sadd.s32 %s93, 1
      %p97 = scmp.eq.s32.totalorder %s15, 3
      %p98 = scmp.ne.s32.totalorder %s93, %s95
      %p99 = scmp.eq.s32.totalorder %s15, 0
      %p100 = por %p98, %p99
      %p101 = scmp.ne.s32.totalorder %s93, %s95
      %p102 = scmp.eq.s32.totalorder %s20, 3
      %p103 = por %p101, %p102
      %p104 = scmp.ne.s32.totalorder %s95, %s96
      %p105 = scmp.eq.s32.totalorder %s20, 0
      %p106 = por %p104, %p105
      %p107 = scmp.ne.s32.totalorder %s95, %s96
      %p108 = scmp.eq.s32.totalorder %s21, 3
      %p109 = por %p107, %p108
      %p111 = scmp.ne.s32.totalorder %s96, %s110
      %p112 = scmp.eq.s32.totalorder %s21, 0
      %p113 = por %p111, %p112
      %s115 = sadd.s32 %s114, 1
      %p118 = scmp.eq.s32.totalorder %s15, 3
      %p119 = scmp.ne.s32.totalorder %s114, %s116
      %p120 = scmp.eq.s32.totalorder %s15, 0
      %p121 = por %p119, %p120
      %p122 = scmp.ne.s32.totalorder %s114, %s116
      %p123 = scmp.eq.s32.totalorder %s20, 3
      %p124 = por %p122, %p123
      %p125 = scmp.ne.s32.totalorder %s116, %s117
      %p126 = scmp.eq.s32.totalorder %s20, 0
      %p127 = por %p125, %p126
      %p128 = scmp.ne.s32.totalorder %s116, %s117
      %p129 = scmp.eq.s32.totalorder %s21, 3
      %p130 = por %p128, %p129
      %p132 = scmp.ne.s32.totalorder %s117, %s131
      %p133 = scmp.eq.s32.totalorder %s21, 0
      %p134 = por %p132, %p133
      %s136 = sadd.s32 %s135, 1
      %p139 = scmp.eq.s32.totalorder %s15, 3
      %p140 = scmp.ne.s32.totalorder %s135, %s137
      %p141 = scmp.eq.s32.totalorder %s15, 0
      %p142 = por %p140, %p141
      %p143 = scmp.ne.s32.totalorder %s135, %s137
      %p144 = scmp.eq.s32.totalorder %s20, 3
      %p145 = por %p143, %p144
      %p146 = scmp.ne.s32.totalorder %s137, %s138
      %p147 = scmp.eq.s32.totalorder %s20, 0
      %p148 = por %p146, %p147
      %p149 = scmp.ne.s32.totalorder %s137, %s138
      %p150 = scmp.eq.s32.totalorder %s21, 3
      %p151 = por %p149, %p150
      %p153 = scmp.ne.s32.totalorder %s138, %s152
      %p154 = scmp.eq.s32.totalorder %s21, 0
      %p155 = por %p153, %p154
      %s157 = sadd.s32 %s156, 1
      %p160 = scmp.eq.s32.totalorder %s15, 3
      %p161 = scmp.ne.s32.totalorder %s156, %s158
      %p162 = scmp.eq.s32.totalorder %s15, 0
      %p163 = por %p161, %p162
      %p164 = scmp.ne.s32.totalorder %s156, %s158
      %p165 = scmp.eq.s32.totalorder %s20, 3
      %p166 = por %p164, %p165
      %p167 = scmp.ne.s32.totalorder %s158, %s159
      %p168 = scmp.eq.s32.totalorder %s20, 0
      %p169 = por %p167, %p168
      %p170 = scmp.ne.s32.totalorder %s158, %s159
      %p171 = scmp.eq.s32.totalorder %s21, 3
      %p172 = por %p170, %p171
      %p174 = scmp.ne.s32.totalorder %s159, %s173
      %p175 = scmp.eq.s32.totalorder %s21, 0
      %p176 = por %p174, %p175
      %s177 = ssub.s32 %s22, %s34
      %s178 = ssub.s32 %s23, %s30
      %s179 = sor.u32 %s177, %s178
      %p180 = scmp.eq.s32.totalorder %s179, 0
      %s182 = sadd.s32 %s181, 1
      %s183 = scalar_select %p180, %s181, %s182
      %p186 = pneg %p180
      %p187 = scmp.eq.s32.totalorder %s15, 3
      %p188 = por %p186, %p187
      %p189 = scmp.ne.s32.totalorder %s181, %s184
      %p190 = scmp.eq.s32.totalorder %s15, 0
      %p191 = por %p189, %p190
      %p192 = scmp.ne.s32.totalorder %s181, %s184
      %p193 = scmp.eq.s32.totalorder %s20, 3
      %p194 = por %p192, %p193
      %p195 = scmp.ne.s32.totalorder %s184, %s185
      %p196 = scmp.eq.s32.totalorder %s20, 0
      %p197 = por %p195, %p196
      %p198 = scmp.ne.s32.totalorder %s184, %s185
      %p199 = scmp.eq.s32.totalorder %s21, 3
      %p200 = por %p198, %p199
      %p202 = scmp.ne.s32.totalorder %s185, %s201
      %p203 = scmp.eq.s32.totalorder %s21, 0
      %p204 = por %p202, %p203
      %p205 = scmp.le.s32.totalorder 1, %s15
      %p206 = scmp.lt.s32.totalorder %s15, 5
      %p207 = pnand %p205, %p206
      %p208 = pneg %p207
      // Predicated region
      $region9: #{decoder_resnet_block.1} parent=5 // pred_check
        _
      $region10: #{decoder_resnet_block.1} parent=5 // pred_check_branch
        %210 = sbr.rel (%p207) target = $region12
      $region11: #{decoder_resnet_block.1} parent=5 // pred_region
        %s211 = ssub.s32 %s15, 1
        // Predicated region
        $region13: #{decoder_resnet_block.1} parent=11 // pred_check
          %p212 = pneg %p106
        $region14: #{decoder_resnet_block.1} parent=11 // pred_check_branch
          %214 = sbr.rel (%p212) target = $region16
        $region15: #{decoder_resnet_block.1} parent=11 // pred_region
          _
        $region16: #{decoder_resnet_block.1} parent=11 // pred_fallthru
          _
        // Predicated region
        $region17: #{decoder_resnet_block.1} parent=11 // pred_check
          %p215 = pneg %p127
        $region18: #{decoder_resnet_block.1} parent=11 // pred_check_branch
          %217 = sbr.rel (%p215) target = $region20
        $region19: #{decoder_resnet_block.1} parent=11 // pred_region
          _
        $region20: #{decoder_resnet_block.1} parent=11 // pred_fallthru
          _
        // Predicated region
        $region21: #{decoder_resnet_block.1} parent=11 // pred_check
          %p218 = pneg %p148
        $region22: #{decoder_resnet_block.1} parent=11 // pred_check_branch
          %220 = sbr.rel (%p218) target = $region24
        $region23: #{decoder_resnet_block.1} parent=11 // pred_region
          _
        $region24: #{decoder_resnet_block.1} parent=11 // pred_fallthru
          _
        // Predicated region
        $region25: #{decoder_resnet_block.1} parent=11 // pred_check
          %p221 = pneg %p169
        $region26: #{decoder_resnet_block.1} parent=11 // pred_check_branch
          %223 = sbr.rel (%p221) target = $region28
        $region27: #{decoder_resnet_block.1} parent=11 // pred_region
          _
        $region28: #{decoder_resnet_block.1} parent=11 // pred_fallthru
          _
      $region12: #{decoder_resnet_block.1} parent=5 // pred_fallthru
        _
      %p224 = scmp.lt.s32.totalorder %s15, 4
      // Predicated region
      $region29: #{decoder_resnet_block.1} parent=5 // pred_check
        %p225 = pneg %p224
      $region30: #{decoder_resnet_block.1} parent=5 // pred_check_branch
        %227 = sbr.rel (%p225) target = $region32
      $region31: #{decoder_resnet_block.1} parent=5 // pred_region
        // Predicated region
        $region33: #{decoder_resnet_block.1} parent=31 // pred_check
          %p228 = pneg %p49
        $region34: #{decoder_resnet_block.1} parent=31 // pred_check_branch
          %230 = sbr.rel (%p228) target = $region36
        $region35: #{decoder_resnet_block.1} parent=31 // pred_region
          %p231 = scmp.lt.s32.totalorder %s22, 1
          %s232 = scalar_select %p231, %s22, 1
          %p233 = scmp.lt.s32.totalorder %s23, 1
          %s234 = scalar_select %p233, %s23, 1
          %s235 = smul.addr %s232, 2
          %s236 = sadd.s32 %s234, %s235
          %s237 = smul.addr %s236, 8
          %s238 = scalar_lea.vmem %s0, %s237
        $region36: #{decoder_resnet_block.1} parent=31 // pred_fallthru
          _
        // Predicated region
        $region37: #{decoder_resnet_block.1} parent=31 // pred_check
          %p239 = pneg %p79
        $region38: #{decoder_resnet_block.1} parent=31 // pred_check_branch
          %241 = sbr.rel (%p239) target = $region40
        $region39: #{decoder_resnet_block.1} parent=31 // pred_region
          %s242 = smul.u32 %s22, 2
          %s243 = sadd.s32 %s242, %s23
          %p244 = scmp.lt.s32.totalorder %s243, 3
          %s245 = scalar_select %p244, %s243, 3
          %s246 = smul.addr %s245, 8
          %s247 = scalar_lea.vmem %s1, %s246
          %s248 = smul.u32 %s22, 2
          %s249 = sadd.s32 %s248, %s23
        $region40: #{decoder_resnet_block.1} parent=31 // pred_fallthru
          _
      $region32: #{decoder_resnet_block.1} parent=5 // pred_fallthru
        _
      %p250 = scmp.le.s32.totalorder 1, %s15
      %p251 = scmp.lt.s32.totalorder %s15, 5
      %p252 = pnand %p250, %p251
      %p253 = pneg %p252
      // Predicated region
      $region41: #{decoder_resnet_block.1} parent=5 // pred_check
        _
      $region42: #{decoder_resnet_block.1} parent=5 // pred_check_branch
        %255 = sbr.rel (%p252) target = $region44
      $region43: #{decoder_resnet_block.1} parent=5 // pred_region
        %s256 = ssub.s32 %s15, 1
        %p257 = scmp.lt.s32.totalorder %s24, 1
        %s258 = scalar_select %p257, %s24, 1
        %p259 = scmp.lt.s32.totalorder %s25, 1
        %s260 = scalar_select %p259, %s25, 1
        %s261 = smul.addr %s258, 2
        %s262 = sadd.s32 %s260, %s261
        %s263 = smul.addr %s262, 8
        %s264 = scalar_lea.vmem %s0, %s263
        %p265 = pneg %p55
        %p266 = pneg %p52
        %s267 = smul.u32 %s24, 2
        %s268 = sadd.s32 %s267, %s25
        %p269 = scmp.lt.s32.totalorder %s268, 3
        %s270 = scalar_select %p269, %s268, 3
        %s271 = smul.addr %s270, 8
        %s272 = scalar_lea.vmem %s1, %s271
        %p273 = pneg %p85
        %p274 = pneg %p82
        %p275 = pneg %p106
        %p276 = pneg %p103
        %p277 = pneg %p127
        %p278 = pneg %p124
        %p279 = pneg %p148
        %p280 = pneg %p145
        %p281 = pneg %p169
        %p282 = pneg %p166
        %p283 = pneg %p197
        %p284 = pneg %p194
        %s285 = sand.u32 %s184, 1
        %s286 = scalar_lea.sflag [#allocation3], %s285
        %s287 = sand.u32 %s184, 1
        %s288 = smul.addr %s287, 8
        %s289 = scalar_lea.vmem [#allocation2], %s288
        %p290 = scmp.lt.s32.totalorder %s24, 1
        %s291 = scalar_select %p290, %s24, 1
        %p292 = scmp.lt.s32.totalorder %s25, 1
        %s293 = scalar_select %p292, %s25, 1
        %s294 = smul.addr %s291, 2
        %s295 = sadd.s32 %s293, %s294
        %s296 = smul.addr %s295, 8
        %s297 = scalar_lea.vmem %s0, %s296
        %s298 = smul.u32 %s24, 2
        %s299 = sadd.s32 %s298, %s25
        %p300 = scmp.lt.s32.totalorder %s299, 3
        %s301 = scalar_select %p300, %s299, 3
        %s302 = smul.addr %s301, 8
        %s303 = scalar_lea.vmem %s1, %s302
        %s304 = smul.u32 %s24, 2
        %s305 = sadd.s32 %s304, %s25
        %v307 = vld [vmem:[%s297] sm:$0xff]
        %v308 = vmul.f32 %v307, 0.2
        %v309 = vmax.f32 %v307, %v308
        %v310 = vld [vmem:[%s303] sm:$0xff]
        %v311 = vmul.f32 %v310, 0.2
        %v312 = vmax.f32 %v310, %v311
        %314 = vrot.lane.b32.xlu0 %v309, 1
        %v315 = vpop.permute.xlu0 %314
        %vm317 = vcmask 7168
        %v318 = vsel %vm317, %v312, %v315
        %v319 = vld [vmem:[%s2] sm:$0xf]
        %v320 = vpack.c.bf16 %v318, %v318
        %s321 = scalar_lea.vmem %s2, 4
        %v322 = vld [vmem:[%s321] sm:$0xf]
        %v323 = vpack.c.bf16 %v309, %v309
        %vm324 = vcmask 64512
        %v326 = vsel %vm324, %v322, 0
        %vm328 = vcmask 1043456
        %v330 = vsel %vm328, %v323, 0
        %332 = vmatpush.bf16.msra.mxu0 0
        %333 = vmatpush.bf16.msra.mxu0 0
        %334 = vmatpush.bf16.msra.mxu0 0
        %335 = vmatpush.bf16.msra.mxu0 0
        %336 = vmatpush.bf16.msra.mxu0 0
        %337 = vmatpush.bf16.msra.mxu0 0
        %338 = vmatpush.bf16.msra.mxu0 0
        %339 = vmatpush.bf16.msra.mxu0 %v330
        %340 = vmatmul.bf16.gmra.mxu0 %v326
        %v341 = vpop.f32.mrf.mxu0
        %v342 = vadd.f32 0.0, %v341
        %v343 = vpop.f32.mrf.mxu0
        %344 = vdwg.mxu0
        %v346 = vsel %vm324, %v319, 0
        %v349 = vsel %vm328, %v320, 0
        %351 = vmatpush.bf16.msra.mxu0 0
        %352 = vmatpush.bf16.msra.mxu0 0
        %353 = vmatpush.bf16.msra.mxu0 0
        %354 = vmatpush.bf16.msra.mxu0 0
        %355 = vmatpush.bf16.msra.mxu0 0
        %356 = vmatpush.bf16.msra.mxu0 0
        %357 = vmatpush.bf16.msra.mxu0 0
        %358 = vmatpush.bf16.msra.mxu0 %v349
        %359 = vmatmul.bf16.gmra.mxu0 %v346
        %v360 = vpop.f32.mrf.mxu0
        %v361 = vadd.f32 %v342, %v360
        %v362 = vpop.f32.mrf.mxu0
        %363 = vdwg.mxu0
        %364 = vrot.lane.b32.xlu0 %v309, 127
        %v365 = vpop.permute.xlu0 %364
        %368 = vrot.lane.b32.xlu0 %v312, 126
        %v369 = vpop.permute.xlu0 %368
        %vm371 = vcmask 1039360
        %v372 = vsel %vm371, %v365, %v369
        %s373 = scalar_lea.vmem %s2, 8
        %v374 = vld [vmem:[%s373] sm:$0xf]
        %v375 = vpack.c.bf16 %v372, %v372
        %v377 = vsel %vm324, %v374, 0
        %v380 = vsel %vm328, %v375, 0
        %382 = vmatpush.bf16.msra.mxu0 0
        %383 = vmatpush.bf16.msra.mxu0 0
        %384 = vmatpush.bf16.msra.mxu0 0
        %385 = vmatpush.bf16.msra.mxu0 0
        %386 = vmatpush.bf16.msra.mxu0 0
        %387 = vmatpush.bf16.msra.mxu0 0
        %388 = vmatpush.bf16.msra.mxu0 0
        %389 = vmatpush.bf16.msra.mxu0 %v380
        %390 = vmatmul.bf16.gmra.mxu0 %v377
        %v391 = vpop.f32.mrf.mxu0
        %v392 = vadd.f32 0.0, %v391
        %v393 = vpop.f32.mrf.mxu0
        %394 = vdwg.mxu0
        %v395 = vadd.f32 %v361, %v392
        %v396 = vld [vmem:[%s5] sm:$0xff]
        %398 = vset.pattern.permute.xlu0 0
        %399 = vperm.xlu0 %398, %v396
        %v400 = vpop.permute.xlu0 %399
        %v402 = vadd.f32 %v395, %v400
        %v403 = vmul.f32 %v402, 0.2
        %v404 = vmax.f32 %v402, %v403
        %v405 = vld [vmem:[%s3] sm:$0xf]
        %v406 = vpack.c.bf16 %v404, %v404
        %v407 = vld [vmem:[%s4] sm:$0xf]
        %v408 = vpack.c.bf16 %v307, %v307
        %v410 = vsel %vm324, %v407, 0
        %v413 = vsel %vm328, %v408, 0
        %415 = vmatpush.bf16.msra.mxu0 0
        %416 = vmatpush.bf16.msra.mxu0 0
        %417 = vmatpush.bf16.msra.mxu0 0
        %418 = vmatpush.bf16.msra.mxu0 0
        %419 = vmatpush.bf16.msra.mxu0 0
        %420 = vmatpush.bf16.msra.mxu0 0
        %421 = vmatpush.bf16.msra.mxu0 0
        %422 = vmatpush.bf16.msra.mxu0 %v413
        %423 = vmatmul.bf16.gmra.mxu0 %v410
        %v424 = vpop.f32.mrf.mxu0
        %v425 = vadd.f32 0.0, %v424
        %v426 = vpop.f32.mrf.mxu0
        %427 = vdwg.mxu0
        %v429 = vsel %vm324, %v405, 0
        %v432 = vsel %vm328, %v406, 0
        %434 = vmatpush.bf16.msra.mxu0 0
        %435 = vmatpush.bf16.msra.mxu0 0
        %436 = vmatpush.bf16.msra.mxu0 0
        %437 = vmatpush.bf16.msra.mxu0 0
        %438 = vmatpush.bf16.msra.mxu0 0
        %439 = vmatpush.bf16.msra.mxu0 0
        %440 = vmatpush.bf16.msra.mxu0 0
        %441 = vmatpush.bf16.msra.mxu0 %v432
        %442 = vmatmul.bf16.gmra.mxu0 %v429
        %v443 = vpop.f32.mrf.mxu0
        %v444 = vadd.f32 %v425, %v443
        %v445 = vpop.f32.mrf.mxu0
        %446 = vdwg.mxu0
        %447 = vset.pattern.permute.xlu0 1
        %448 = vperm.xlu0 %447, %v396
        %v449 = vpop.permute.xlu0 %448
        %v451 = vadd.f32 %v444, %v449
        %452 = vst [vmem:[%s289] sm:$0xff] %v451
        %s453 = sand.u32 %s184, 1
        %s454 = scalar_lea.sflag [#allocation3], %s453
        %s455 = sand.u32 %s184, 1
        %s456 = smul.addr %s455, 8
        %s457 = scalar_lea.vmem [#allocation2], %s456
        // Predicated region
        $region45: #{decoder_resnet_block.1} parent=43 // pred_check
          %p458 = pneg %p194
        $region46: #{decoder_resnet_block.1} parent=43 // pred_check_branch
          %460 = sbr.rel (%p458) target = $region48
        $region47: #{decoder_resnet_block.1} parent=43 // pred_region
          %462 = vsyncadd %s454, 0
          %s463 = smul.addr %s24, 2
          %s464 = sadd.s32 %s25, %s463
          %s465 = smul.addr %s464, 8
          %s466 = scalar_lea.hbm %s6, %s465
          %s468 = sshll.u32 %s457, 4
          %s469 = int_to_ptr.vmem [resolvable:$true] %s468
          %s470 = sshll.u32 %s466, 4
          %s471 = int_to_ptr.hbm [resolvable:$true] %s470
          %473 = dma.vmem_to_hbm [thread:$0]  %s469, 128, %s471, %s454
        $region48: #{decoder_resnet_block.1} parent=43 // pred_fallthru
          _
      $region44: #{decoder_resnet_block.1} parent=5 // pred_fallthru
        _
      %p474 = scmp.le.s32.totalorder 2, %s15
      // Predicated region
      $region49: #{decoder_resnet_block.1} parent=5 // pred_check
        %p475 = pneg %p474
      $region50: #{decoder_resnet_block.1} parent=5 // pred_check_branch
        %477 = sbr.rel (%p475) target = $region52
      $region51: #{decoder_resnet_block.1} parent=5 // pred_region
        %s478 = ssub.s32 %s15, 2
        // Predicated region
        $region53: #{decoder_resnet_block.1} parent=51 // pred_check
          %p479 = pneg %p200
        $region54: #{decoder_resnet_block.1} parent=51 // pred_check_branch
          %481 = sbr.rel (%p479) target = $region56
        $region55: #{decoder_resnet_block.1} parent=51 // pred_region
          %s482 = sand.u32 %s185, 1
          %s483 = scalar_lea.sflag [#allocation3], %s482
          %s484 = sand.u32 %s185, 1
          %s485 = smul.addr %s484, 8
          %s486 = scalar_lea.vmem [#allocation2], %s485
          %488 = dma.done %s483, 128
        $region56: #{decoder_resnet_block.1} parent=51 // pred_fallthru
          _
      $region52: #{decoder_resnet_block.1} parent=5 // pred_fallthru
        _
    $region6: #{decoder_resnet_block.1} parent=1 // loop_footer
      %s19 = sadd.s32 1, %s15
    $region7: #{decoder_resnet_block.1} parent=1 // loop_footer_branch
      %14 = sbr.rel target = $region3
    $region8: #{decoder_resnet_block.1} parent=1 // loop_exit
      _
    %489 = vsyncpa [#allocation3], 1
    %s490 = scalar_lea.sflag [#allocation3], 1
    %491 = vsyncpa %s490, 1

</llo_original>
